<compile_context>
chip_gen: v7x
topology: tpu7x:2x2x1
jax: 0.10.0
libtpu: 0.0.40
codegen_flags: <defaults>
</compile_context>

<pallas_src>
import functools

import jax
import jax.numpy as jnp
from jax.experimental import pallas as pl
from jax.experimental.pallas import tpu as pltpu

EPS = 1e-5  # nn.LayerNorm default


def _round_up(x, m):
    return (x + m - 1) // m * m


def _normalize(x_f32, d_real, need_mask):
    """LayerNorm (no affine) on f32 rows; padded feature columns zeroed."""
    inv_d = 1.0 / float(d_real)
    mean = jnp.sum(x_f32, axis=-1, keepdims=True) * inv_d
    centered = x_f32 - mean
    if need_mask:
        col = jax.lax.broadcasted_iota(jnp.int32, x_f32.shape, 1)
        centered = jnp.where(col < d_real, centered, 0.0)
    var = jnp.sum(centered * centered, axis=-1, keepdims=True) * inv_d
    return centered * jax.lax.rsqrt(var + EPS)


def _make_direct_kernel(d_real, d_pad):
    """Single-column-tile case: fuse normalize + matmul, no scratch."""
    need_mask = d_pad != d_real

    def kernel(x_ref, w_ref, b_ref, o_ref):
        xn = _normalize(x_ref[...].astype(jnp.float32), d_real, need_mask)
        out = jnp.dot(
            xn.astype(w_ref.dtype), w_ref[...], preferred_element_type=jnp.float32
        )
        o_ref[...] = (out + b_ref[...].astype(jnp.float32)).astype(o_ref.dtype)

    return kernel


def _make_scratch_kernel(d_real, d_pad):
    """Multi-column-tile case: normalize once per row tile into VMEM scratch."""
    need_mask = d_pad != d_real

    def kernel(x_ref, w_ref, b_ref, o_ref, xn_ref):
        j = pl.program_id(1)

        @pl.when(j == 0)
        def _():
            xn = _normalize(x_ref[...].astype(jnp.float32), d_real, need_mask)
            xn_ref[...] = xn.astype(xn_ref.dtype)

        out = jnp.dot(xn_ref[...], w_ref[...], preferred_element_type=jnp.float32)
        o_ref[...] = (out + b_ref[...].astype(jnp.float32)).astype(o_ref.dtype)

    return kernel


@functools.partial(jax.jit, static_argnames=("tm", "tn"))
def prenorm(x, gamma, beta, w, b, *, tm=256, tn=512):
    """PreNorm(Linear): x (B, N, D) -> (B, N, D_out)."""
    B, N, D = x.shape
    D_out = w.shape[1]
    rows = B * N

    # Fold the LayerNorm affine into the Linear (algebraically identical).
    wf = gamma[:, None].astype(w.dtype) * w
    bf = (beta.astype(w.dtype) @ w + b).reshape(1, D_out)

    # Lane-dense padding: trailing dims -> multiples of 128.
    Dp = _round_up(D, 128)
    Np = _round_up(D_out, 128)

    # Row tile: large by default, aligned to 16 (covers bf16 sublane packing),
    # shrunk for tiny inputs; rows padded instead of asserting divisibility.
    row_align = 16
    tm_eff = max(row_align, min(tm, _round_up(rows, row_align)))
    rows_p = _round_up(rows, tm_eff)

    # Weight column tile: multiple of 128 that divides Np.
    tn_eff = min(_round_up(tn, 128), Np)
    while Np % tn_eff != 0:
        tn_eff -= 128
    tn_eff = max(tn_eff, 128)

    x2 = x.reshape(rows, D)
    if rows_p != rows or Dp != D:
        x2 = jnp.pad(x2, ((0, rows_p - rows), (0, Dp - D)))
    if Dp != D or Np != D_out:
        wf = jnp.pad(wf, ((0, Dp - D), (0, Np - D_out)))
        bf = jnp.pad(bf, ((0, 0), (0, Np - D_out)))

    grid = (rows_p // tm_eff, Np // tn_eff)
    n_col_tiles = grid[1]
    use_scratch = n_col_tiles > 1

    x_bytes = jnp.dtype(x.dtype).itemsize
    w_bytes = jnp.dtype(wf.dtype).itemsize

    # Explicit VMEM budget: double-buffered x / w / b / out blocks, plus the
    # (single-buffered) normalized-row scratch, plus headroom.
    needed = 2 * (
        tm_eff * Dp * x_bytes
        + Dp * tn_eff * w_bytes
        + 8 * tn_eff * w_bytes
        + tm_eff * tn_eff * x_bytes
    )
    if use_scratch:
        needed += tm_eff * Dp * w_bytes
    vmem_limit = max(32 << 20, min(int(needed * 1.5) + (4 << 20), 100 << 20))

    cost = pl.CostEstimate(
        flops=2 * rows_p * Dp * Np + 8 * rows_p * Dp,
        transcendentals=rows_p,  # one rsqrt per row
        bytes_accessed=(
            rows_p * Dp * x_bytes  # x fetched once per row tile
            + Dp * Np * w_bytes
            + rows_p * Np * x_bytes
        ),
    )

    if use_scratch:
        kernel = _make_scratch_kernel(D, Dp)
        scratch_shapes = [pltpu.VMEM((tm_eff, Dp), wf.dtype)]
        # Column axis carries the scratch dependence -> arbitrary (serial);
        # row axis stays parallel for megacore sharding.
        dim_sem = ("parallel", "arbitrary")
    else:
        kernel = _make_direct_kernel(D, Dp)
        scratch_shapes = []
        dim_sem = ("parallel", "parallel")

    out = pl.pallas_call(
        kernel,
        out_shape=jax.ShapeDtypeStruct((rows_p, Np), x.dtype),
        grid_spec=pltpu.PrefetchScalarGridSpec(
            num_scalar_prefetch=0,
            grid=grid,
            in_specs=[
                pl.BlockSpec((tm_eff, Dp), lambda i, j: (i, 0)),   # x rows
                pl.BlockSpec((Dp, tn_eff), lambda i, j: (0, j)),   # folded weight
                pl.BlockSpec((1, tn_eff), lambda i, j: (0, j)),    # folded bias
            ],
            out_specs=pl.BlockSpec((tm_eff, tn_eff), lambda i, j: (i, j)),
            scratch_shapes=scratch_shapes,
        ),
        compiler_params=pltpu.CompilerParams(
            dimension_semantics=dim_sem,
            vmem_limit_bytes=vmem_limit,
        ),
        cost_estimate=cost,
    )(x2, wf, bf)

    return out[:rows, :D_out].reshape(B, N, D_out)


def prenorm_ref(x, gamma, beta, w, b):
    xf = x.astype(jnp.float32)
    mean = jnp.mean(xf, axis=-1, keepdims=True)
    var = jnp.mean((xf - mean) ** 2, axis=-1, keepdims=True)
    xn = (xf - mean) * jax.lax.rsqrt(var + EPS)
    y = xn * gamma.astype(jnp.float32) + beta.astype(jnp.float32)
    return (y @ w.astype(jnp.float32) + b.astype(jnp.float32)).astype(x.dtype)


if __name__ == "__main__":
    B, N, D = 2, 8, 32  # batch=2, seq=8, hidden dim=32

    key = jax.random.PRNGKey(0)
    kx, kw, kb, kg, kbeta = jax.random.split(key, 5)

    x = jax.random.normal(kx, (B, N, D), dtype=jnp.float32)

    # LayerNorm params (PyTorch default init: weight=1, bias=0)
    gamma = jnp.ones((D,), dtype=jnp.float32)
    beta = jnp.zeros((D,), dtype=jnp.float32)

    # Deterministic params for the wrapped `fn` (a Linear(dim, dim))
    w = jax.random.normal(kw, (D, D), dtype=jnp.float32) * 0.05
    b = jax.random.normal(kb, (D,), dtype=jnp.float32) * 0.05

    out = prenorm(x, gamma, beta, w, b)
    out = jax.block_until_ready(out)
    ref = prenorm_ref(x, gamma, beta, w, b)
    assert out.shape == (B, N, D)
    assert jnp.allclose(out, ref, atol=1e-4, rtol=1e-4), "mismatch vs reference"

    # Second check with non-trivial LayerNorm affine (validates gamma/beta folding).
    gamma2 = 1.0 + 0.1 * jax.random.normal(kg, (D,), dtype=jnp.float32)
    beta2 = 0.1 * jax.random.normal(kbeta, (D,), dtype=jnp.float32)
    out2 = jax.block_until_ready(prenorm(x, gamma2, beta2, w, b))
    ref2 = prenorm_ref(x, gamma2, beta2, w, b)
    assert jnp.allclose(out2, ref2, atol=1e-4, rtol=1e-4), "mismatch (affine folding)"

    # Third check: larger, non-aligned shape exercising the multi-column-tile
    # (scratch) kernel path and row/feature padding.
    B3, N3, D3, Dout3 = 3, 50, 200, 640
    k1, k2, k3, k4, k5 = jax.random.split(jax.random.PRNGKey(1), 5)
    x3 = jax.random.normal(k1, (B3, N3, D3), dtype=jnp.float32)
    g3 = 1.0 + 0.1 * jax.random.normal(k2, (D3,), dtype=jnp.float32)
    be3 = 0.1 * jax.random.normal(k3, (D3,), dtype=jnp.float32)
    w3 = jax.random.normal(k4, (D3, Dout3), dtype=jnp.float32) * 0.05
    b3 = jax.random.normal(k5, (Dout3,), dtype=jnp.float32) * 0.05
    out3 = jax.block_until_ready(prenorm(x3, g3, be3, w3, b3, tn=256))
    ref3 = prenorm_ref(x3, g3, be3, w3, b3)
    assert out3.shape == (B3, N3, Dout3)
    assert jnp.allclose(out3, ref3, atol=2e-4, rtol=2e-4), "mismatch (tiled path)"

    print("KERNEL_OK")
</pallas_src>

<mosaic_0001>
module attributes {stable_mosaic.version = 11 : i64} {
  func.func @kernel(%arg0: i32, %arg1: i32, %arg2: memref<16x128xf32, #tpu.memory_space<vmem>>, %arg3: memref<128x128xf32, #tpu.memory_space<vmem>>, %arg4: memref<1x128xf32, #tpu.memory_space<vmem>>, %arg5: memref<16x128xf32, #tpu.memory_space<vmem>>) attributes {dimension_semantics = [#tpu.dimension_semantics<parallel>, #tpu.dimension_semantics<parallel>], iteration_bounds = array<i64: 1, 1>, scalar_prefetch = 0 : i64, scratch_operands = 0 : i64, tpu.core_type = #tpu.core_type<tc>, window_params = [{transform_indices = @transform_0, window_bounds = array<i64: 16, 128>}, {transform_indices = @transform_1, window_bounds = array<i64: 128, 128>}, {transform_indices = @transform_2, window_bounds = array<i64: 1, 128>}, {transform_indices = @transform_3, window_bounds = array<i64: 16, 128>}]} {
    %c0 = arith.constant 0 : index
    %c0_0 = arith.constant 0 : index
    %0 = vector.load %arg2[%c0, %c0_0] : memref<16x128xf32, #tpu.memory_space<vmem>>, vector<16x128xf32>
    %cst = arith.constant dense<0.000000e+00> : vector<16xf32>
    %1 = vector.multi_reduction <add>, %0, %cst [1] : vector<16x128xf32> to vector<16xf32>
    %2 = vector.shape_cast %1 : vector<16xf32> to vector<16x1xf32>
    %cst_1 = arith.constant 3.125000e-02 : f32
    %3 = vector.broadcast %cst_1 : f32 to vector<16x1xf32>
    %4 = arith.mulf %2, %3 : vector<16x1xf32>
    %5 = vector.broadcast %4 : vector<16x1xf32> to vector<16x128xf32>
    %6 = arith.subf %0, %5 : vector<16x128xf32>
    %7 = tpu.iota {dimensions = array<i32: 1>} : vector<16x128xi32>
    %c32_i32 = arith.constant 32 : i32
    %8 = vector.broadcast %c32_i32 : i32 to vector<16x128xi32>
    %9 = arith.cmpi slt, %7, %8 : vector<16x128xi32>
    %cst_2 = arith.constant 0.000000e+00 : f32
    %10 = vector.broadcast %cst_2 : f32 to vector<16x128xf32>
    %11 = arith.select %9, %6, %10 : vector<16x128xi1>, vector<16x128xf32>
    %12 = arith.mulf %11, %11 : vector<16x128xf32>
    %cst_3 = arith.constant dense<0.000000e+00> : vector<16xf32>
    %13 = vector.multi_reduction <add>, %12, %cst_3 [1] : vector<16x128xf32> to vector<16xf32>
    %14 = vector.shape_cast %13 : vector<16xf32> to vector<16x1xf32>
    %cst_4 = arith.constant 3.125000e-02 : f32
    %15 = vector.broadcast %cst_4 : f32 to vector<16x1xf32>
    %16 = arith.mulf %14, %15 : vector<16x1xf32>
    %cst_5 = arith.constant 9.99999974E-6 : f32
    %17 = vector.broadcast %cst_5 : f32 to vector<16x1xf32>
    %18 = arith.addf %16, %17 : vector<16x1xf32>
    %19 = math.rsqrt %18 : vector<16x1xf32>
    %20 = vector.broadcast %19 : vector<16x1xf32> to vector<16x128xf32>
    %21 = arith.mulf %11, %20 : vector<16x128xf32>
    %c0_6 = arith.constant 0 : index
    %c0_7 = arith.constant 0 : index
    %22 = vector.load %arg3[%c0_6, %c0_7] : memref<128x128xf32, #tpu.memory_space<vmem>>, vector<128x128xf32>
    %cst_8 = arith.constant dense<0.000000e+00> : vector<16x128xf32>
    %23 = tpu.matmul %21, %22, %cst_8 {dimension_numbers = #tpu.dot_dimension_numbers<[1], [0], [0], [1], [0, 0, 1, 1], [], []>} : vector<16x128xf32>, vector<128x128xf32>, vector<16x128xf32> -> vector<16x128xf32>
    %c0_9 = arith.constant 0 : index
    %c0_10 = arith.constant 0 : index
    %24 = vector.load %arg4[%c0_9, %c0_10] : memref<1x128xf32, #tpu.memory_space<vmem>>, vector<1x128xf32>
    %25 = vector.broadcast %24 : vector<1x128xf32> to vector<16x128xf32>
    %26 = arith.addf %23, %25 : vector<16x128xf32>
    %c0_11 = arith.constant 0 : index
    %c0_12 = arith.constant 0 : index
    %27 = vector.load %arg5[%c0_11, %c0_12] : memref<16x128xf32, #tpu.memory_space<vmem>>, vector<16x128xf32>
    tpu.vector_store %arg5[%c0_11, %c0_12], %26 {strides = array<i32>} : memref<16x128xf32, #tpu.memory_space<vmem>>, vector<16x128xf32>,
    return
  }
  func.func @transform_0(%arg0: i32, %arg1: i32) -> (i32, i32) {
    %c0_i32 = arith.constant 0 : i32
    %c0_i32_0 = arith.constant 0 : i32
    return %arg0, %c0_i32 : i32, i32
  }
  func.func @transform_1(%arg0: i32, %arg1: i32) -> (i32, i32) {
    %c0_i32 = arith.constant 0 : i32
    %c0_i32_0 = arith.constant 0 : i32
    return %c0_i32, %arg1 : i32, i32
  }
  func.func @transform_2(%arg0: i32, %arg1: i32) -> (i32, i32) {
    %c0_i32 = arith.constant 0 : i32
    %c0_i32_0 = arith.constant 0 : i32
    return %c0_i32, %arg1 : i32, i32
  }
  func.func @transform_3(%arg0: i32, %arg1: i32) -> (i32, i32) {
    %c0_i32 = arith.constant 0 : i32
    return %arg0, %arg1 : i32, i32
  }
}

</mosaic_0001>

<llo_original>
// kernel: prenorm.1
$region0: #{prenorm.1}
  #allocation0 [shape = 'u32[]', space=smem, size = 0x4, offset = 0x4, fixed_abs, tag = 'smem constant byte address 0x4 - core index']
  #allocation1 [shape = 'u32[144,128]{1,0:T(1,128)}', space=vmem, size = 0x12000, scoped, tag = 'internal scratch']
  %s0 = inlined_call_operand.vmem [shape: f32[16,128], index: 0, kind: input, shape index: {}]
  %s1 = inlined_call_operand.vmem [shape: f32[128,128], index: 1, kind: input, shape index: {}]
  %s2 = inlined_call_operand.vmem [shape: f32[1,128], index: 2, kind: input, shape index: {}]
  %s3 = inlined_call_operand.vmem [shape: f32[16,128], index: 3, kind: output, shape index: {}]
  %s4 = sld [smem:[#allocation0]]
  $region22: #{prenorm.1} parent=0
    _
  %s6 = ssub.s32 1, %s4
  %s7 = scalar_select 0, %s6, %s4
  // Predicated region
  $region2: #{prenorm.1} parent=0 // pred_check
    _
  $region3: #{prenorm.1} parent=0 // pred_check_branch
    %9 = sbr.rel (0) target = $region5
  $region4: #{prenorm.1} parent=0 // pred_region
    _
  $region5: #{prenorm.1} parent=0 // pred_fallthru
    _
  // Predicated region
  $region6: #{prenorm.1} parent=0 // pred_check
    _
  $region7: #{prenorm.1} parent=0 // pred_check_branch
    %11 = sbr.rel (0) target = $region9
  $region8: #{prenorm.1} parent=0 // pred_region
    _
  $region9: #{prenorm.1} parent=0 // pred_fallthru
    _
  // Predicated region
  $region10: #{prenorm.1} parent=0 // pred_check
    _
  $region11: #{prenorm.1} parent=0 // pred_check_branch
    %13 = sbr.rel (0) target = $region13
  $region12: #{prenorm.1} parent=0 // pred_region
    _
  $region13: #{prenorm.1} parent=0 // pred_fallthru
    _
  %v14 = vld [vmem:[%s0] sm:$0xff]
  %v15 = vld [vmem:[%s0 + $0x8] sm:$0xff]
  %16 = vadd.xlane.f32.xlu0 %v14
  %v17 = vpop.xlane.xlu0 %16
  %18 = vadd.xlane.f32.xlu0 %v15
  %v19 = vpop.xlane.xlu0 %18
  %v20 = vmul.f32 %v17, 0.03125
  %v21 = vmul.f32 %v19, 0.03125
  %v22 = vsub.f32 %v14, %v20
  %v23 = vsub.f32 %v15, %v21
  %v24 = vlaneseq
  %v25 = vand.u32 %v24, 127
  %vm26 = vcmp.lt.s32.totalorder %v25, 32
  %v27 = vsel %vm26, %v22, 0.0
  %v28 = vsel %vm26, %v23, 0.0
  %v29 = vmul.f32 %v27, %v27
  %v30 = vmul.f32 %v28, %v28
  %31 = vadd.xlane.f32.xlu0 %v29
  %v32 = vpop.xlane.xlu0 %31
  %33 = vadd.xlane.f32.xlu0 %v30
  %v34 = vpop.xlane.xlu0 %33
  %v35 = vmul.f32 %v32, 0.03125
  %v36 = vmul.f32 %v34, 0.03125
  %v37 = vadd.f32 %v35, 1e-05
  %v38 = vadd.f32 %v36, 1e-05
  %v39 = vrsqrt.pop %v37
  %v40 = vrsqrt.pop %v38
  %v41 = vmul.f32 %v27, %v39
  %v42 = vmul.f32 %v28, %v40
  %v43 = vld [vmem:[%s1] sm:$0xff]
  %v44 = vld [vmem:[%s1 + $0x8] sm:$0xff]
  %v45 = vld [vmem:[%s1 + $0x10] sm:$0xff]
  %v46 = vld [vmem:[%s1 + $0x18] sm:$0xff]
  %v47 = vld [vmem:[%s1 + $0x20] sm:$0xff]
  %v48 = vld [vmem:[%s1 + $0x28] sm:$0xff]
  %v49 = vld [vmem:[%s1 + $0x30] sm:$0xff]
  %v50 = vld [vmem:[%s1 + $0x38] sm:$0xff]
  %v51 = vld [vmem:[%s1 + $0x40] sm:$0xff]
  %v52 = vld [vmem:[%s1 + $0x48] sm:$0xff]
  %v53 = vld [vmem:[%s1 + $0x50] sm:$0xff]
  %v54 = vld [vmem:[%s1 + $0x58] sm:$0xff]
  %v55 = vld [vmem:[%s1 + $0x60] sm:$0xff]
  %v56 = vld [vmem:[%s1 + $0x68] sm:$0xff]
  %v57 = vld [vmem:[%s1 + $0x70] sm:$0xff]
  %v58 = vld [vmem:[%s1 + $0x78] sm:$0xff]
  %v59 = vld [vmem:[%s2] sm:$0x1]
  %v61 = vlaneseq
  %v62 = vshrl.u32 %v61, 7
  %v63 = vsub.s32 0, %v62
  %v64 = vrot.slane %v59, %v63
  %66 = vmatprep.subr.mxu0 0.0
  %67 = vmatpush1.msra.mxu0 %v43
  %68 = vmatprep.subr.mxu0 0.0
  %69 = vmatpush1.msra.mxu0 %v44
  %70 = vmatprep.subr.mxu0 0.0
  %71 = vmatpush1.msra.mxu0 %v45
  %72 = vmatprep.subr.mxu0 0.0
  %73 = vmatpush1.msra.mxu0 %v46
  %74 = vmatprep.subr.mxu0 0.0
  %75 = vmatpush1.msra.mxu0 %v47
  %76 = vmatprep.subr.mxu0 0.0
  %77 = vmatpush1.msra.mxu0 %v48
  %78 = vmatprep.subr.mxu0 0.0
  %79 = vmatpush1.msra.mxu0 %v49
  %80 = vmatprep.subr.mxu0 0.0
  %81 = vmatpush1.msra.mxu0 %v50
  %82 = vmatprep.subr.mxu0 0.0
  %83 = vmatpush1.msra.mxu0 %v51
  %84 = vmatprep.subr.mxu0 0.0
  %85 = vmatpush1.msra.mxu0 %v52
  %86 = vmatprep.subr.mxu0 0.0
  %87 = vmatpush1.msra.mxu0 %v53
  %88 = vmatprep.subr.mxu0 0.0
  %89 = vmatpush1.msra.mxu0 %v54
  %90 = vmatprep.subr.mxu0 0.0
  %91 = vmatpush1.msra.mxu0 %v55
  %92 = vmatprep.subr.mxu0 0.0
  %93 = vmatpush1.msra.mxu0 %v56
  %94 = vmatprep.subr.mxu0 0.0
  %95 = vmatpush1.msra.mxu0 %v57
  %96 = vmatprep.subr.mxu0 0.0
  %97 = vmatpush1.msra.mxu0 %v58
  %98 = vmatprep.subr.mxu0 0.0
  %99 = vmatpush1.msra.mxu0 0.0
  %100 = vmatprep.subr.mxu0 0.0
  %101 = vmatpush1.msra.mxu0 0.0
  %102 = vmatprep.subr.mxu0 0.0
  %103 = vmatpush1.msra.mxu0 0.0
  %104 = vmatprep.subr.mxu0 0.0
  %105 = vmatpush1.msra.mxu0 0.0
  %106 = vmatprep.subr.mxu0 0.0
  %107 = vmatpush1.msra.mxu0 0.0
  %108 = vmatprep.subr.mxu0 0.0
  %109 = vmatpush1.msra.mxu0 0.0
  %110 = vmatprep.subr.mxu0 0.0
  %111 = vmatpush1.msra.mxu0 0.0
  %112 = vmatprep.subr.mxu0 0.0
  %113 = vmatpush1.msra.mxu0 0.0
  %114 = vmatprep.subr.mxu0 0.0
  %115 = vmatpush1.msra.mxu0 0.0
  %116 = vmatprep.subr.mxu0 0.0
  %117 = vmatpush1.msra.mxu0 0.0
  %118 = vmatprep.subr.mxu0 0.0
  %119 = vmatpush1.msra.mxu0 0.0
  %120 = vmatprep.subr.mxu0 0.0
  %121 = vmatpush1.msra.mxu0 0.0
  %122 = vmatprep.subr.mxu0 0.0
  %123 = vmatpush1.msra.mxu0 0.0
  %124 = vmatprep.subr.mxu0 0.0
  %125 = vmatpush1.msra.mxu0 0.0
  %126 = vmatprep.subr.mxu0 0.0
  %127 = vmatpush1.msra.mxu0 0.0
  %128 = vmatprep.subr.mxu0 0.0
  %129 = vmatpush1.msra.mxu0 0.0
  %130 = vmatprep.mubr.f32.mxu0 0.0
  %131 = vmatmul.mubr.f32.gmra.mrb[0].mxu0 %v41
  %v132 = vpop.f32.mrb[0].mxu0
  %v133 = vadd.f32 %v64, %v132
  %v134 = vpop.f32.mrb[0].mxu0
  %135 = vmatprep.mubr.f32.mxu0 0.0
  %136 = vmatmul.mubr.f32.gmra.mrb[0].mxu0 %v42
  %v137 = vpop.f32.mrb[0].mxu0
  %v138 = vadd.f32 %v64, %v137
  %v139 = vpop.f32.mrb[0].mxu0
  %140 = vdwg.mxu0
  %141 = vst [vmem:[%s3] sm:$0xff] %v133
  %142 = vst [vmem:[%s3 + $0x8] sm:$0xff] %v138
  // Predicated region
  $region14: #{prenorm.1} parent=0 // pred_check
    _
  $region15: #{prenorm.1} parent=0 // pred_check_branch
    %144 = sbr.rel (0) target = $region17
  $region16: #{prenorm.1} parent=0 // pred_region
    _
  $region17: #{prenorm.1} parent=0 // pred_fallthru
    _
  // Predicated region
  $region18: #{prenorm.1} parent=0 // pred_check
    _
  $region19: #{prenorm.1} parent=0 // pred_check_branch
    %146 = sbr.rel (0) target = $region21
  $region20: #{prenorm.1} parent=0 // pred_region
    _
  $region21: #{prenorm.1} parent=0 // pred_fallthru
    _

</llo_original>
